<compile_context>
chip_gen: v5e
topology: v5e:2x2
jax: 0.10.0
libtpu: 0.0.40
codegen_flags: <defaults>
</compile_context>

<pallas_src>
import jax
import jax.numpy as jnp
import numpy as np
from jax import lax
from jax.experimental import pallas as pl
from jax.experimental.pallas import tpu as pltpu

# ---- "config" (deterministic, in-script) -------------------------------------------
NUM_CLASSES = 4
FOCAL_GAMMA = 2.0
CONSISTENCY_WEIGHT = 0.1          # config.CONSISTENCY_LOSS_WEIGHT
FORENSICS_WEIGHT = 0.1            # config.FORENSICS_LOSS_WEIGHT
FOCAL_ALPHA = (0.25, 0.50, 0.75, 1.00)     # config.FOCAL_ALPHA
CLASS_WEIGHTS = (1.00, 2.00, 1.50, 0.50)   # config.CLASS_WEIGHTS


def _gather_const(tgt_col, values):
    """Lookup table gather realized as a chain of VPU selects on int32 targets.

    tgt_col: (B, 1) int32; values: python tuple of floats (compile-time constants).
    Avoids passing the constant table as a VMEM input (saves a DMA per call).
    """
    res = jnp.full(tgt_col.shape, float(values[-1]), dtype=jnp.float32)
    for c in range(len(values) - 2, -1, -1):
        res = jnp.where(tgt_col == c, jnp.float32(values[c]), res)
    return res


def _digamma(x):
    """Digamma via recurrence (push x >= 6) + asymptotic series. Valid for x > 0.

    Divides are routed to the EUP with approximate reciprocals; the resulting error
    (<~1e-3 absolute, further scaled by FORENSICS_WEIGHT) is well inside tolerance.
    """
    res = jnp.zeros_like(x)
    for _ in range(6):
        res = res - jnp.where(x < 6.0, pl.reciprocal(x, approx=True), 0.0)
        x = jnp.where(x < 6.0, x + 1.0, x)
    inv = pl.reciprocal(x, approx=True)
    inv2 = inv * inv
    res = res + jnp.log(x) - 0.5 * inv - inv2 * (
        1.0 / 12.0 - inv2 * (1.0 / 120.0 - inv2 / 252.0))
    return res


def _loss_kernel(logits_ref, tgt_col_ref, tgt_row_ref, feats_ref, alpha_ref, out_ref):
    logits = logits_ref[...].astype(jnp.float32)      # (B, C)
    tgt_col = tgt_col_ref[...]                        # (B, 1) int32
    tgt_row = tgt_row_ref[...]                        # (1, B) int32
    feats = feats_ref[...].astype(jnp.float32)        # (B, D)
    alpha_ev = alpha_ref[...].astype(jnp.float32)     # (B, C)

    B, C = logits.shape
    inv_B = 1.0 / float(B)

    # One-hot built in-kernel: iota + compare (pure VPU, no extra HBM input).
    class_iota = lax.broadcasted_iota(jnp.int32, (B, C), 1)
    onehot = (class_iota == tgt_col).astype(jnp.float32)           # (B, C)

    # ---- per-sample cross entropy (reduction='none') ----
    m = jnp.max(logits, axis=1, keepdims=True)
    lse = m + jnp.log(jnp.sum(jnp.exp(logits - m), axis=1, keepdims=True))
    ce = lse - jnp.sum(onehot * logits, axis=1, keepdims=True)     # (B, 1)

    # ---- focal loss ----
    pt = jnp.exp(-ce)
    alpha_t = _gather_const(tgt_col, FOCAL_ALPHA)                  # (B, 1)
    if float(FOCAL_GAMMA) == 2.0:
        d = 1.0 - pt
        pow_g = d * d          # exact PyTorch (1-pt)**2, no log/exp on the EUP
    else:                      # fallback for non-integer gamma
        base = jnp.maximum(1.0 - pt, 1e-30)
        pow_g = jnp.where(1.0 - pt > 0.0,
                          jnp.exp(FOCAL_GAMMA * jnp.log(base)), 0.0)
    focal = jnp.sum(alpha_t * pow_g * ce) * inv_B

    # ---- class-weighted cross entropy (PyTorch: sum(w_t*ce)/sum(w_t)) ----
    w_t = _gather_const(tgt_col, CLASS_WEIGHTS)                    # (B, 1)
    ce_w = jnp.sum(w_t * ce) / jnp.sum(w_t)

    # ---- forensics consistency loss ----
    sumsq = jnp.sum(feats * feats, axis=1, keepdims=True)
    fn = feats * lax.rsqrt(jnp.maximum(sumsq, 1e-24))              # F.normalize(p=2)
    sim = lax.dot_general(fn, fn, (((1,), (1,)), ((), ())),
                          preferred_element_type=jnp.float32)      # (B, B) on the MXU
    same = tgt_col == tgt_row                                      # (B, B) VPU compare
    cons_terms = jnp.where(same, 1.0 - sim, jnp.maximum(sim - 0.2, 0.0))
    consistency = jnp.sum(cons_terms) * (inv_B * inv_B)

    # ---- evidential loss: gather alpha[target] first, digamma on (B,1) only ----
    S = jnp.sum(alpha_ev, axis=1, keepdims=True)                   # (B, 1)
    alpha_tgt = jnp.sum(onehot * alpha_ev, axis=1, keepdims=True)  # (B, 1) exact gather
    evidential = jnp.sum(_digamma(S) - _digamma(alpha_tgt)) * inv_B

    total = (0.6 * focal + 0.4 * ce_w
             + CONSISTENCY_WEIGHT * consistency
             + FORENSICS_WEIGHT * evidential)
    out_ref[0, 0] = total


def simplified_loss(logits, targets, features, alpha):
    B, C = logits.shape
    tgt = targets.astype(jnp.int32)
    out = pl.pallas_call(
        _loss_kernel,
        out_shape=jax.ShapeDtypeStruct((1, 1), jnp.float32),
        in_specs=[pl.BlockSpec(memory_space=pltpu.MemorySpace.VMEM)] * 5,
        out_specs=pl.BlockSpec(memory_space=pltpu.MemorySpace.SMEM),
    )(logits, tgt.reshape(B, 1), tgt.reshape(1, B), features, alpha)
    return out[0, 0]


def reference_loss(logits, targets, features, alpha):
    """Pure-JAX reference mirroring the PyTorch module."""
    focal_alpha = jnp.asarray(FOCAL_ALPHA, dtype=jnp.float32)
    class_weights = jnp.asarray(CLASS_WEIGHTS, dtype=jnp.float32)
    logp = jax.nn.log_softmax(logits, axis=1)
    ce = -jnp.take_along_axis(logp, targets[:, None], axis=1)[:, 0]
    pt = jnp.exp(-ce)
    at = focal_alpha[targets]
    focal = jnp.mean(at * (1.0 - pt) ** FOCAL_GAMMA * ce)
    wt = class_weights[targets]
    ce_w = jnp.sum(wt * ce) / jnp.sum(wt)
    fn = features / jnp.maximum(
        jnp.sqrt(jnp.sum(features ** 2, axis=1, keepdims=True)), 1e-12)
    sim = fn @ fn.T
    same = (targets[:, None] == targets[None, :]).astype(jnp.float32)
    pos = same * (1.0 - sim)
    neg = (1.0 - same) * jnp.maximum(sim - 0.2, 0.0)
    cons = (pos.sum() + neg.sum()) / targets.shape[0] ** 2
    oh = jax.nn.one_hot(targets, NUM_CLASSES, dtype=jnp.float32)
    S = jnp.sum(alpha, axis=1, keepdims=True)
    ev = jnp.mean(jnp.sum(
        oh * (jax.scipy.special.digamma(S) - jax.scipy.special.digamma(alpha)),
        axis=1))
    return (0.6 * focal + 0.4 * ce_w
            + CONSISTENCY_WEIGHT * cons + FORENSICS_WEIGHT * ev)


if __name__ == "__main__":
    key = jax.random.PRNGKey(0)
    k1, k2, k3, k4 = jax.random.split(key, 4)

    B, C, D = 8, NUM_CLASSES, 32
    logits = jax.random.normal(k1, (B, C), dtype=jnp.float32)
    targets = jax.random.randint(k2, (B,), 0, C, dtype=jnp.int32)
    features = jax.random.normal(k3, (B, D), dtype=jnp.float32)
    # Evidential alpha must be > 0 (typically >= 1): softplus(x) + 1
    alpha_ev = jax.nn.softplus(jax.random.normal(k4, (B, C), dtype=jnp.float32)) + 1.0

    loss = simplified_loss(logits, targets, features, alpha_ev)
    loss = jax.block_until_ready(loss)

    ref = jax.block_until_ready(reference_loss(logits, targets, features, alpha_ev))
    np.testing.assert_allclose(np.asarray(loss), np.asarray(ref),
                               rtol=1e-2, atol=1e-3)
    print("KERNEL_OK")
</pallas_src>

<mosaic_0001>
module attributes {stable_mosaic.version = 11 : i64} {
  func.func @_loss_kernel(%arg0: memref<8x4xf32, #tpu.memory_space<vmem>>, %arg1: memref<8x1xi32, #tpu.memory_space<vmem>>, %arg2: memref<1x8xi32, #tpu.memory_space<vmem>>, %arg3: memref<8x32xf32, #tpu.memory_space<vmem>>, %arg4: memref<8x4xf32, #tpu.memory_space<vmem>>, %arg5: memref<1x1xf32, #tpu.memory_space<smem>>) attributes {dimension_semantics = [], scalar_prefetch = 0 : i64, scratch_operands = 0 : i64, tpu.core_type = #tpu.core_type<tc>} {
    %c0 = arith.constant 0 : index
    %c0_0 = arith.constant 0 : index
    %0 = vector.load %arg0[%c0, %c0_0] : memref<8x4xf32, #tpu.memory_space<vmem>>, vector<8x4xf32>
    %c0_1 = arith.constant 0 : index
    %c0_2 = arith.constant 0 : index
    %1 = vector.load %arg1[%c0_1, %c0_2] : memref<8x1xi32, #tpu.memory_space<vmem>>, vector<8x1xi32>
    %c0_3 = arith.constant 0 : index
    %c0_4 = arith.constant 0 : index
    %2 = vector.load %arg2[%c0_3, %c0_4] : memref<1x8xi32, #tpu.memory_space<vmem>>, vector<1x8xi32>
    %c0_5 = arith.constant 0 : index
    %c0_6 = arith.constant 0 : index
    %3 = vector.load %arg3[%c0_5, %c0_6] : memref<8x32xf32, #tpu.memory_space<vmem>>, vector<8x32xf32>
    %c0_7 = arith.constant 0 : index
    %c0_8 = arith.constant 0 : index
    %4 = vector.load %arg4[%c0_7, %c0_8] : memref<8x4xf32, #tpu.memory_space<vmem>>, vector<8x4xf32>
    %5 = tpu.iota {dimensions = array<i32: 1>} : vector<8x4xi32>
    %6 = vector.broadcast %1 : vector<8x1xi32> to vector<8x4xi32>
    %7 = arith.cmpi eq, %5, %6 : vector<8x4xi32>
    %8 = arith.extui %7 : vector<8x4xi1> to vector<8x4xi32>
    %9 = arith.sitofp %8 : vector<8x4xi32> to vector<8x4xf32>
    %cst = arith.constant dense<0xFF800000> : vector<8xf32>
    %10 = vector.multi_reduction <maximumf>, %0, %cst [1] : vector<8x4xf32> to vector<8xf32>
    %11 = vector.shape_cast %10 : vector<8xf32> to vector<8x1xf32>
    %12 = vector.broadcast %11 : vector<8x1xf32> to vector<8x4xf32>
    %13 = arith.subf %0, %12 : vector<8x4xf32>
    %14 = math.exp %13 : vector<8x4xf32>
    %cst_9 = arith.constant dense<0.000000e+00> : vector<8xf32>
    %15 = vector.multi_reduction <add>, %14, %cst_9 [1] : vector<8x4xf32> to vector<8xf32>
    %16 = vector.shape_cast %15 : vector<8xf32> to vector<8x1xf32>
    %17 = math.log %16 : vector<8x1xf32>
    %18 = arith.addf %11, %17 : vector<8x1xf32>
    %19 = arith.mulf %9, %0 : vector<8x4xf32>
    %cst_10 = arith.constant dense<0.000000e+00> : vector<8xf32>
    %20 = vector.multi_reduction <add>, %19, %cst_10 [1] : vector<8x4xf32> to vector<8xf32>
    %21 = vector.shape_cast %20 : vector<8xf32> to vector<8x1xf32>
    %22 = arith.subf %18, %21 : vector<8x1xf32>
    %cst_11 = arith.constant 0.000000e+00 : f32
    %23 = vector.broadcast %cst_11 : f32 to vector<8x1xf32>
    %24 = arith.subf %23, %22 : vector<8x1xf32>
    %25 = math.exp %24 : vector<8x1xf32>
    %cst_12 = arith.constant 1.000000e+00 : f32
    %26 = vector.broadcast %cst_12 : f32 to vector<8x1xf32>
    %c2_i32 = arith.constant 2 : i32
    %27 = vector.broadcast %c2_i32 : i32 to vector<8x1xi32>
    %28 = arith.cmpi eq, %1, %27 : vector<8x1xi32>
    %cst_13 = arith.constant 7.500000e-01 : f32
    %29 = vector.broadcast %cst_13 : f32 to vector<8x1xf32>
    %30 = arith.select %28, %29, %26 : vector<8x1xi1>, vector<8x1xf32>
    %c1_i32 = arith.constant 1 : i32
    %31 = vector.broadcast %c1_i32 : i32 to vector<8x1xi32>
    %32 = arith.cmpi eq, %1, %31 : vector<8x1xi32>
    %cst_14 = arith.constant 5.000000e-01 : f32
    %33 = vector.broadcast %cst_14 : f32 to vector<8x1xf32>
    %34 = arith.select %32, %33, %30 : vector<8x1xi1>, vector<8x1xf32>
    %c0_i32 = arith.constant 0 : i32
    %35 = vector.broadcast %c0_i32 : i32 to vector<8x1xi32>
    %36 = arith.cmpi eq, %1, %35 : vector<8x1xi32>
    %cst_15 = arith.constant 2.500000e-01 : f32
    %37 = vector.broadcast %cst_15 : f32 to vector<8x1xf32>
    %38 = arith.select %36, %37, %34 : vector<8x1xi1>, vector<8x1xf32>
    %cst_16 = arith.constant 1.000000e+00 : f32
    %39 = vector.broadcast %cst_16 : f32 to vector<8x1xf32>
    %40 = arith.subf %39, %25 : vector<8x1xf32>
    %41 = arith.mulf %40, %40 : vector<8x1xf32>
    %42 = arith.mulf %38, %41 : vector<8x1xf32>
    %43 = arith.mulf %42, %22 : vector<8x1xf32>
    %44 = vector.shape_cast %43 : vector<8x1xf32> to vector<1x8x1xf32>
    %cst_17 = arith.constant dense<0.000000e+00> : vector<1xf32>
    %45 = vector.multi_reduction <add>, %44, %cst_17 [1, 2] : vector<1x8x1xf32> to vector<1xf32>
    %46 = vector.shape_cast %45 : vector<1xf32> to vector<1x1x1xf32>
    %47 = vector.extract %46[0, 0, 0] : f32 from vector<1x1x1xf32>
    %cst_18 = arith.constant 1.250000e-01 : f32
    %48 = arith.mulf %47, %cst_18 : f32
    %cst_19 = arith.constant 5.000000e-01 : f32
    %49 = vector.broadcast %cst_19 : f32 to vector<8x1xf32>
    %c2_i32_20 = arith.constant 2 : i32
    %50 = vector.broadcast %c2_i32_20 : i32 to vector<8x1xi32>
    %51 = arith.cmpi eq, %1, %50 : vector<8x1xi32>
    %cst_21 = arith.constant 1.500000e+00 : f32
    %52 = vector.broadcast %cst_21 : f32 to vector<8x1xf32>
    %53 = arith.select %51, %52, %49 : vector<8x1xi1>, vector<8x1xf32>
    %c1_i32_22 = arith.constant 1 : i32
    %54 = vector.broadcast %c1_i32_22 : i32 to vector<8x1xi32>
    %55 = arith.cmpi eq, %1, %54 : vector<8x1xi32>
    %cst_23 = arith.constant 2.000000e+00 : f32
    %56 = vector.broadcast %cst_23 : f32 to vector<8x1xf32>
    %57 = arith.select %55, %56, %53 : vector<8x1xi1>, vector<8x1xf32>
    %c0_i32_24 = arith.constant 0 : i32
    %58 = vector.broadcast %c0_i32_24 : i32 to vector<8x1xi32>
    %59 = arith.cmpi eq, %1, %58 : vector<8x1xi32>
    %cst_25 = arith.constant 1.000000e+00 : f32
    %60 = vector.broadcast %cst_25 : f32 to vector<8x1xf32>
    %61 = arith.select %59, %60, %57 : vector<8x1xi1>, vector<8x1xf32>
    %62 = arith.mulf %61, %22 : vector<8x1xf32>
    %63 = vector.shape_cast %62 : vector<8x1xf32> to vector<1x8x1xf32>
    %cst_26 = arith.constant dense<0.000000e+00> : vector<1xf32>
    %64 = vector.multi_reduction <add>, %63, %cst_26 [1, 2] : vector<1x8x1xf32> to vector<1xf32>
    %65 = vector.shape_cast %64 : vector<1xf32> to vector<1x1x1xf32>
    %66 = vector.extract %65[0, 0, 0] : f32 from vector<1x1x1xf32>
    %67 = vector.shape_cast %61 : vector<8x1xf32> to vector<1x8x1xf32>
    %cst_27 = arith.constant dense<0.000000e+00> : vector<1xf32>
    %68 = vector.multi_reduction <add>, %67, %cst_27 [1, 2] : vector<1x8x1xf32> to vector<1xf32>
    %69 = vector.shape_cast %68 : vector<1xf32> to vector<1x1x1xf32>
    %70 = vector.extract %69[0, 0, 0] : f32 from vector<1x1x1xf32>
    %71 = arith.divf %66, %70 : f32
    %72 = arith.mulf %3, %3 : vector<8x32xf32>
    %cst_28 = arith.constant dense<0.000000e+00> : vector<8xf32>
    %73 = vector.multi_reduction <add>, %72, %cst_28 [1] : vector<8x32xf32> to vector<8xf32>
    %74 = vector.shape_cast %73 : vector<8xf32> to vector<8x1xf32>
    %cst_29 = arith.constant 1.000000e-24 : f32
    %75 = vector.broadcast %cst_29 : f32 to vector<8x1xf32>
    %76 = arith.maximumf %74, %75 : vector<8x1xf32>
    %77 = math.rsqrt %76 : vector<8x1xf32>
    %78 = vector.broadcast %77 : vector<8x1xf32> to vector<8x32xf32>
    %79 = arith.mulf %3, %78 : vector<8x32xf32>
    %cst_30 = arith.constant dense<0.000000e+00> : vector<8x8xf32>
    %80 = tpu.matmul %79, %79, %cst_30 {dimension_numbers = #tpu.dot_dimension_numbers<[1], [1], [0], [0], [0, 0, 1, 0], [], []>} : vector<8x32xf32>, vector<8x32xf32>, vector<8x8xf32> -> vector<8x8xf32>
    %81 = vector.broadcast %1 : vector<8x1xi32> to vector<8x8xi32>
    %82 = vector.broadcast %2 : vector<1x8xi32> to vector<8x8xi32>
    %83 = arith.cmpi eq, %81, %82 : vector<8x8xi32>
    %cst_31 = arith.constant 1.000000e+00 : f32
    %84 = vector.broadcast %cst_31 : f32 to vector<8x8xf32>
    %85 = arith.subf %84, %80 : vector<8x8xf32>
    %cst_32 = arith.constant 2.000000e-01 : f32
    %86 = vector.broadcast %cst_32 : f32 to vector<8x8xf32>
    %87 = arith.subf %80, %86 : vector<8x8xf32>
    %cst_33 = arith.constant 0.000000e+00 : f32
    %88 = vector.broadcast %cst_33 : f32 to vector<8x8xf32>
    %89 = arith.maximumf %87, %88 : vector<8x8xf32>
    %90 = arith.select %83, %85, %89 : vector<8x8xi1>, vector<8x8xf32>
    %91 = vector.shape_cast %90 : vector<8x8xf32> to vector<1x8x8xf32>
    %cst_34 = arith.constant dense<0.000000e+00> : vector<1xf32>
    %92 = vector.multi_reduction <add>, %91, %cst_34 [1, 2] : vector<1x8x8xf32> to vector<1xf32>
    %93 = vector.shape_cast %92 : vector<1xf32> to vector<1x1x1xf32>
    %94 = vector.extract %93[0, 0, 0] : f32 from vector<1x1x1xf32>
    %cst_35 = arith.constant 1.562500e-02 : f32
    %95 = arith.mulf %94, %cst_35 : f32
    %cst_36 = arith.constant dense<0.000000e+00> : vector<8xf32>
    %96 = vector.multi_reduction <add>, %4, %cst_36 [1] : vector<8x4xf32> to vector<8xf32>
    %97 = vector.shape_cast %96 : vector<8xf32> to vector<8x1xf32>
    %98 = arith.mulf %9, %4 : vector<8x4xf32>
    %cst_37 = arith.constant dense<0.000000e+00> : vector<8xf32>
    %99 = vector.multi_reduction <add>, %98, %cst_37 [1] : vector<8x4xf32> to vector<8xf32>
    %100 = vector.shape_cast %99 : vector<8xf32> to vector<8x1xf32>
    %cst_38 = arith.constant 0.000000e+00 : f32
    %101 = vector.broadcast %cst_38 : f32 to vector<8x1xf32>
    %cst_39 = arith.constant 6.000000e+00 : f32
    %102 = vector.broadcast %cst_39 : f32 to vector<8x1xf32>
    %103 = arith.cmpf olt, %97, %102 : vector<8x1xf32>
    %104 = tpu.reciprocal %97 {approx = true} : vector<8x1xf32> -> vector<8x1xf32>
    %cst_40 = arith.constant 0.000000e+00 : f32
    %105 = vector.broadcast %cst_40 : f32 to vector<8x1xf32>
    %106 = arith.select %103, %104, %105 : vector<8x1xi1>, vector<8x1xf32>
    %107 = arith.subf %101, %106 : vector<8x1xf32>
    %cst_41 = arith.constant 6.000000e+00 : f32
    %108 = vector.broadcast %cst_41 : f32 to vector<8x1xf32>
    %109 = arith.cmpf olt, %97, %108 : vector<8x1xf32>
    %cst_42 = arith.constant 1.000000e+00 : f32
    %110 = vector.broadcast %cst_42 : f32 to vector<8x1xf32>
    %111 = arith.addf %97, %110 : vector<8x1xf32>
    %112 = arith.select %109, %111, %97 : vector<8x1xi1>, vector<8x1xf32>
    %cst_43 = arith.constant 6.000000e+00 : f32
    %113 = vector.broadcast %cst_43 : f32 to vector<8x1xf32>
    %114 = arith.cmpf olt, %112, %113 : vector<8x1xf32>
    %115 = tpu.reciprocal %112 {approx = true} : vector<8x1xf32> -> vector<8x1xf32>
    %cst_44 = arith.constant 0.000000e+00 : f32
    %116 = vector.broadcast %cst_44 : f32 to vector<8x1xf32>
    %117 = arith.select %114, %115, %116 : vector<8x1xi1>, vector<8x1xf32>
    %118 = arith.subf %107, %117 : vector<8x1xf32>
    %cst_45 = arith.constant 6.000000e+00 : f32
    %119 = vector.broadcast %cst_45 : f32 to vector<8x1xf32>
    %120 = arith.cmpf olt, %112, %119 : vector<8x1xf32>
    %cst_46 = arith.constant 1.000000e+00 : f32
    %121 = vector.broadcast %cst_46 : f32 to vector<8x1xf32>
    %122 = arith.addf %112, %121 : vector<8x1xf32>
    %123 = arith.select %120, %122, %112 : vector<8x1xi1>, vector<8x1xf32>
    %cst_47 = arith.constant 6.000000e+00 : f32
    %124 = vector.broadcast %cst_47 : f32 to vector<8x1xf32>
    %125 = arith.cmpf olt, %123, %124 : vector<8x1xf32>
    %126 = tpu.reciprocal %123 {approx = true} : vector<8x1xf32> -> vector<8x1xf32>
    %cst_48 = arith.constant 0.000000e+00 : f32
    %127 = vector.broadcast %cst_48 : f32 to vector<8x1xf32>
    %128 = arith.select %125, %126, %127 : vector<8x1xi1>, vector<8x1xf32>
    %129 = arith.subf %118, %128 : vector<8x1xf32>
    %cst_49 = arith.constant 6.000000e+00 : f32
    %130 = vector.broadcast %cst_49 : f32 to vector<8x1xf32>
    %131 = arith.cmpf olt, %123, %130 : vector<8x1xf32>
    %cst_50 = arith.constant 1.000000e+00 : f32
    %132 = vector.broadcast %cst_50 : f32 to vector<8x1xf32>
    %133 = arith.addf %123, %132 : vector<8x1xf32>
    %134 = arith.select %131, %133, %123 : vector<8x1xi1>, vector<8x1xf32>
    %cst_51 = arith.constant 6.000000e+00 : f32
    %135 = vector.broadcast %cst_51 : f32 to vector<8x1xf32>
    %136 = arith.cmpf olt, %134, %135 : vector<8x1xf32>
    %137 = tpu.reciprocal %134 {approx = true} : vector<8x1xf32> -> vector<8x1xf32>
    %cst_52 = arith.constant 0.000000e+00 : f32
    %138 = vector.broadcast %cst_52 : f32 to vector<8x1xf32>
    %139 = arith.select %136, %137, %138 : vector<8x1xi1>, vector<8x1xf32>
    %140 = arith.subf %129, %139 : vector<8x1xf32>
    %cst_53 = arith.constant 6.000000e+00 : f32
    %141 = vector.broadcast %cst_53 : f32 to vector<8x1xf32>
    %142 = arith.cmpf olt, %134, %141 : vector<8x1xf32>
    %cst_54 = arith.constant 1.000000e+00 : f32
    %143 = vector.broadcast %cst_54 : f32 to vector<8x1xf32>
    %144 = arith.addf %134, %143 : vector<8x1xf32>
    %145 = arith.select %142, %144, %134 : vector<8x1xi1>, vector<8x1xf32>
    %cst_55 = arith.constant 6.000000e+00 : f32
    %146 = vector.broadcast %cst_55 : f32 to vector<8x1xf32>
    %147 = arith.cmpf olt, %145, %146 : vector<8x1xf32>
    %148 = tpu.reciprocal %145 {approx = true} : vector<8x1xf32> -> vector<8x1xf32>
    %cst_56 = arith.constant 0.000000e+00 : f32
    %149 = vector.broadcast %cst_56 : f32 to vector<8x1xf32>
    %150 = arith.select %147, %148, %149 : vector<8x1xi1>, vector<8x1xf32>
    %151 = arith.subf %140, %150 : vector<8x1xf32>
    %cst_57 = arith.constant 6.000000e+00 : f32
    %152 = vector.broadcast %cst_57 : f32 to vector<8x1xf32>
    %153 = arith.cmpf olt, %145, %152 : vector<8x1xf32>
    %cst_58 = arith.constant 1.000000e+00 : f32
    %154 = vector.broadcast %cst_58 : f32 to vector<8x1xf32>
    %155 = arith.addf %145, %154 : vector<8x1xf32>
    %156 = arith.select %153, %155, %145 : vector<8x1xi1>, vector<8x1xf32>
    %cst_59 = arith.constant 6.000000e+00 : f32
    %157 = vector.broadcast %cst_59 : f32 to vector<8x1xf32>
    %158 = arith.cmpf olt, %156, %157 : vector<8x1xf32>
    %159 = tpu.reciprocal %156 {approx = true} : vector<8x1xf32> -> vector<8x1xf32>
    %cst_60 = arith.constant 0.000000e+00 : f32
    %160 = vector.broadcast %cst_60 : f32 to vector<8x1xf32>
    %161 = arith.select %158, %159, %160 : vector<8x1xi1>, vector<8x1xf32>
    %162 = arith.subf %151, %161 : vector<8x1xf32>
    %cst_61 = arith.constant 6.000000e+00 : f32
    %163 = vector.broadcast %cst_61 : f32 to vector<8x1xf32>
    %164 = arith.cmpf olt, %156, %163 : vector<8x1xf32>
    %cst_62 = arith.constant 1.000000e+00 : f32
    %165 = vector.broadcast %cst_62 : f32 to vector<8x1xf32>
    %166 = arith.addf %156, %165 : vector<8x1xf32>
    %167 = arith.select %164, %166, %156 : vector<8x1xi1>, vector<8x1xf32>
    %168 = tpu.reciprocal %167 {approx = true} : vector<8x1xf32> -> vector<8x1xf32>
    %169 = arith.mulf %168, %168 : vector<8x1xf32>
    %170 = math.log %167 : vector<8x1xf32>
    %171 = arith.addf %162, %170 : vector<8x1xf32>
    %cst_63 = arith.constant 5.000000e-01 : f32
    %172 = vector.broadcast %cst_63 : f32 to vector<8x1xf32>
    %173 = arith.mulf %172, %168 : vector<8x1xf32>
    %174 = arith.subf %171, %173 : vector<8x1xf32>
    %cst_64 = arith.constant 2.520000e+02 : f32
    %175 = vector.broadcast %cst_64 : f32 to vector<8x1xf32>
    %176 = arith.divf %169, %175 : vector<8x1xf32>
    %cst_65 = arith.constant 0.00833333377 : f32
    %177 = vector.broadcast %cst_65 : f32 to vector<8x1xf32>
    %178 = arith.subf %177, %176 : vector<8x1xf32>
    %179 = arith.mulf %169, %178 : vector<8x1xf32>
    %cst_66 = arith.constant 0.0833333358 : f32
    %180 = vector.broadcast %cst_66 : f32 to vector<8x1xf32>
    %181 = arith.subf %180, %179 : vector<8x1xf32>
    %182 = arith.mulf %169, %181 : vector<8x1xf32>
    %183 = arith.subf %174, %182 : vector<8x1xf32>
    %cst_67 = arith.constant 0.000000e+00 : f32
    %184 = vector.broadcast %cst_67 : f32 to vector<8x1xf32>
    %cst_68 = arith.constant 6.000000e+00 : f32
    %185 = vector.broadcast %cst_68 : f32 to vector<8x1xf32>
    %186 = arith.cmpf olt, %100, %185 : vector<8x1xf32>
    %187 = tpu.reciprocal %100 {approx = true} : vector<8x1xf32> -> vector<8x1xf32>
    %cst_69 = arith.constant 0.000000e+00 : f32
    %188 = vector.broadcast %cst_69 : f32 to vector<8x1xf32>
    %189 = arith.select %186, %187, %188 : vector<8x1xi1>, vector<8x1xf32>
    %190 = arith.subf %184, %189 : vector<8x1xf32>
    %cst_70 = arith.constant 6.000000e+00 : f32
    %191 = vector.broadcast %cst_70 : f32 to vector<8x1xf32>
    %192 = arith.cmpf olt, %100, %191 : vector<8x1xf32>
    %cst_71 = arith.constant 1.000000e+00 : f32
    %193 = vector.broadcast %cst_71 : f32 to vector<8x1xf32>
    %194 = arith.addf %100, %193 : vector<8x1xf32>
    %195 = arith.select %192, %194, %100 : vector<8x1xi1>, vector<8x1xf32>
    %cst_72 = arith.constant 6.000000e+00 : f32
    %196 = vector.broadcast %cst_72 : f32 to vector<8x1xf32>
    %197 = arith.cmpf olt, %195, %196 : vector<8x1xf32>
    %198 = tpu.reciprocal %195 {approx = true} : vector<8x1xf32> -> vector<8x1xf32>
    %cst_73 = arith.constant 0.000000e+00 : f32
    %199 = vector.broadcast %cst_73 : f32 to vector<8x1xf32>
    %200 = arith.select %197, %198, %199 : vector<8x1xi1>, vector<8x1xf32>
    %201 = arith.subf %190, %200 : vector<8x1xf32>
    %cst_74 = arith.constant 6.000000e+00 : f32
    %202 = vector.broadcast %cst_74 : f32 to vector<8x1xf32>
    %203 = arith.cmpf olt, %195, %202 : vector<8x1xf32>
    %cst_75 = arith.constant 1.000000e+00 : f32
    %204 = vector.broadcast %cst_75 : f32 to vector<8x1xf32>
    %205 = arith.addf %195, %204 : vector<8x1xf32>
    %206 = arith.select %203, %205, %195 : vector<8x1xi1>, vector<8x1xf32>
    %cst_76 = arith.constant 6.000000e+00 : f32
    %207 = vector.broadcast %cst_76 : f32 to vector<8x1xf32>
    %208 = arith.cmpf olt, %206, %207 : vector<8x1xf32>
    %209 = tpu.reciprocal %206 {approx = true} : vector<8x1xf32> -> vector<8x1xf32>
    %cst_77 = arith.constant 0.000000e+00 : f32
    %210 = vector.broadcast %cst_77 : f32 to vector<8x1xf32>
    %211 = arith.select %208, %209, %210 : vector<8x1xi1>, vector<8x1xf32>
    %212 = arith.subf %201, %211 : vector<8x1xf32>
    %cst_78 = arith.constant 6.000000e+00 : f32
    %213 = vector.broadcast %cst_78 : f32 to vector<8x1xf32>
    %214 = arith.cmpf olt, %206, %213 : vector<8x1xf32>
    %cst_79 = arith.constant 1.000000e+00 : f32
    %215 = vector.broadcast %cst_79 : f32 to vector<8x1xf32>
    %216 = arith.addf %206, %215 : vector<8x1xf32>
    %217 = arith.select %214, %216, %206 : vector<8x1xi1>, vector<8x1xf32>
    %cst_80 = arith.constant 6.000000e+00 : f32
    %218 = vector.broadcast %cst_80 : f32 to vector<8x1xf32>
    %219 = arith.cmpf olt, %217, %218 : vector<8x1xf32>
    %220 = tpu.reciprocal %217 {approx = true} : vector<8x1xf32> -> vector<8x1xf32>
    %cst_81 = arith.constant 0.000000e+00 : f32
    %221 = vector.broadcast %cst_81 : f32 to vector<8x1xf32>
    %222 = arith.select %219, %220, %221 : vector<8x1xi1>, vector<8x1xf32>
    %223 = arith.subf %212, %222 : vector<8x1xf32>
    %cst_82 = arith.constant 6.000000e+00 : f32
    %224 = vector.broadcast %cst_82 : f32 to vector<8x1xf32>
    %225 = arith.cmpf olt, %217, %224 : vector<8x1xf32>
    %cst_83 = arith.constant 1.000000e+00 : f32
    %226 = vector.broadcast %cst_83 : f32 to vector<8x1xf32>
    %227 = arith.addf %217, %226 : vector<8x1xf32>
    %228 = arith.select %225, %227, %217 : vector<8x1xi1>, vector<8x1xf32>
    %cst_84 = arith.constant 6.000000e+00 : f32
    %229 = vector.broadcast %cst_84 : f32 to vector<8x1xf32>
    %230 = arith.cmpf olt, %228, %229 : vector<8x1xf32>
    %231 = tpu.reciprocal %228 {approx = true} : vector<8x1xf32> -> vector<8x1xf32>
    %cst_85 = arith.constant 0.000000e+00 : f32
    %232 = vector.broadcast %cst_85 : f32 to vector<8x1xf32>
    %233 = arith.select %230, %231, %232 : vector<8x1xi1>, vector<8x1xf32>
    %234 = arith.subf %223, %233 : vector<8x1xf32>
    %cst_86 = arith.constant 6.000000e+00 : f32
    %235 = vector.broadcast %cst_86 : f32 to vector<8x1xf32>
    %236 = arith.cmpf olt, %228, %235 : vector<8x1xf32>
    %cst_87 = arith.constant 1.000000e+00 : f32
    %237 = vector.broadcast %cst_87 : f32 to vector<8x1xf32>
    %238 = arith.addf %228, %237 : vector<8x1xf32>
    %239 = arith.select %236, %238, %228 : vector<8x1xi1>, vector<8x1xf32>
    %cst_88 = arith.constant 6.000000e+00 : f32
    %240 = vector.broadcast %cst_88 : f32 to vector<8x1xf32>
    %241 = arith.cmpf olt, %239, %240 : vector<8x1xf32>
    %242 = tpu.reciprocal %239 {approx = true} : vector<8x1xf32> -> vector<8x1xf32>
    %cst_89 = arith.constant 0.000000e+00 : f32
    %243 = vector.broadcast %cst_89 : f32 to vector<8x1xf32>
    %244 = arith.select %241, %242, %243 : vector<8x1xi1>, vector<8x1xf32>
    %245 = arith.subf %234, %244 : vector<8x1xf32>
    %cst_90 = arith.constant 6.000000e+00 : f32
    %246 = vector.broadcast %cst_90 : f32 to vector<8x1xf32>
    %247 = arith.cmpf olt, %239, %246 : vector<8x1xf32>
    %cst_91 = arith.constant 1.000000e+00 : f32
    %248 = vector.broadcast %cst_91 : f32 to vector<8x1xf32>
    %249 = arith.addf %239, %248 : vector<8x1xf32>
    %250 = arith.select %247, %249, %239 : vector<8x1xi1>, vector<8x1xf32>
    %251 = tpu.reciprocal %250 {approx = true} : vector<8x1xf32> -> vector<8x1xf32>
    %252 = arith.mulf %251, %251 : vector<8x1xf32>
    %253 = math.log %250 : vector<8x1xf32>
    %254 = arith.addf %245, %253 : vector<8x1xf32>
    %cst_92 = arith.constant 5.000000e-01 : f32
    %255 = vector.broadcast %cst_92 : f32 to vector<8x1xf32>
    %256 = arith.mulf %255, %251 : vector<8x1xf32>
    %257 = arith.subf %254, %256 : vector<8x1xf32>
    %cst_93 = arith.constant 2.520000e+02 : f32
    %258 = vector.broadcast %cst_93 : f32 to vector<8x1xf32>
    %259 = arith.divf %252, %258 : vector<8x1xf32>
    %cst_94 = arith.constant 0.00833333377 : f32
    %260 = vector.broadcast %cst_94 : f32 to vector<8x1xf32>
    %261 = arith.subf %260, %259 : vector<8x1xf32>
    %262 = arith.mulf %252, %261 : vector<8x1xf32>
    %cst_95 = arith.constant 0.0833333358 : f32
    %263 = vector.broadcast %cst_95 : f32 to vector<8x1xf32>
    %264 = arith.subf %263, %262 : vector<8x1xf32>
    %265 = arith.mulf %252, %264 : vector<8x1xf32>
    %266 = arith.subf %257, %265 : vector<8x1xf32>
    %267 = arith.subf %183, %266 : vector<8x1xf32>
    %268 = vector.shape_cast %267 : vector<8x1xf32> to vector<1x8x1xf32>
    %cst_96 = arith.constant dense<0.000000e+00> : vector<1xf32>
    %269 = vector.multi_reduction <add>, %268, %cst_96 [1, 2] : vector<1x8x1xf32> to vector<1xf32>
    %270 = vector.shape_cast %269 : vector<1xf32> to vector<1x1x1xf32>
    %271 = vector.extract %270[0, 0, 0] : f32 from vector<1x1x1xf32>
    %cst_97 = arith.constant 1.250000e-01 : f32
    %272 = arith.mulf %271, %cst_97 : f32
    %cst_98 = arith.constant 6.000000e-01 : f32
    %273 = arith.mulf %cst_98, %48 : f32
    %cst_99 = arith.constant 4.000000e-01 : f32
    %274 = arith.mulf %cst_99, %71 : f32
    %275 = arith.addf %273, %274 : f32
    %cst_100 = arith.constant 1.000000e-01 : f32
    %276 = arith.mulf %cst_100, %95 : f32
    %277 = arith.addf %275, %276 : f32
    %cst_101 = arith.constant 1.000000e-01 : f32
    %278 = arith.mulf %cst_101, %272 : f32
    %279 = arith.addf %277, %278 : f32
    %c0_102 = arith.constant 0 : index
    %c0_103 = arith.constant 0 : index
    %280 = memref.load %arg5[%c0_102, %c0_103] : memref<1x1xf32, #tpu.memory_space<smem>>
    memref.store %279, %arg5[%c0_102, %c0_103] : memref<1x1xf32, #tpu.memory_space<smem>>
    return
  }
}

</mosaic_0001>

<llo_original>
// kernel: tpu_custom_call.1
$region0: #{tpu_custom_call.1}
  #allocation0 [shape = 'u32[]', space=smem, size = 0x4, offset = 0x4, fixed_abs, tag = 'smem constant byte address 0x4 - core index']
  #allocation1 [shape = 'u32[72,128]{1,0:T(1,128)}', space=vmem, size = 0x9000, scoped, tag = 'internal scratch']
  %s0 = inlined_call_operand.vmem [shape: f32[8,4], index: 0, kind: input, shape index: {}]
  %s1 = inlined_call_operand.vmem [shape: s32[8,1], index: 1, kind: input, shape index: {}]
  %s2 = inlined_call_operand.vmem [shape: s32[1,8], index: 2, kind: input, shape index: {}]
  %s3 = inlined_call_operand.vmem [shape: f32[8,32], index: 3, kind: input, shape index: {}]
  %s4 = inlined_call_operand.vmem [shape: f32[8,4], index: 4, kind: input, shape index: {}]
  %s5 = inlined_call_operand.hbm [shape: f32[1,1], index: 5, kind: output, shape index: {}]
  %s6 = sld [smem:[#allocation0]]
  $region30: #{tpu_custom_call.1} parent=0
    _
  %s8 = ssub.s32 1, %s6
  %s9 = scalar_select 0, %s8, %s6
  $region1: #{tpu_custom_call.1} parent=0
    #allocation2 [shape = 'u8[512]{0}', space=smem, size = 0x200, scoped, tag = 'output window, operand 0, single buffered']
    #allocation3 [shape = 's32[1]{0}', space=sflag, size = 0x4, scoped, tag = 'scoped memory for tpu_custom_call.1']
    %10 = vsyncpa [#allocation3], 0
    // Predicated region
    $region2: #{tpu_custom_call.1} parent=1 // pred_check
      _
    $region3: #{tpu_custom_call.1} parent=1 // pred_check_branch
      %12 = sbr.rel (0) target = $region5
    $region4: #{tpu_custom_call.1} parent=1 // pred_region
      _
    $region5: #{tpu_custom_call.1} parent=1 // pred_fallthru
      _
    // Predicated region
    $region6: #{tpu_custom_call.1} parent=1 // pred_check
      _
    $region7: #{tpu_custom_call.1} parent=1 // pred_check_branch
      %14 = sbr.rel (0) target = $region9
    $region8: #{tpu_custom_call.1} parent=1 // pred_region
      _
    $region9: #{tpu_custom_call.1} parent=1 // pred_fallthru
      _
    // Predicated region
    $region10: #{tpu_custom_call.1} parent=1 // pred_check
      _
    $region11: #{tpu_custom_call.1} parent=1 // pred_check_branch
      %16 = sbr.rel (0) target = $region13
    $region12: #{tpu_custom_call.1} parent=1 // pred_region
      _
    $region13: #{tpu_custom_call.1} parent=1 // pred_fallthru
      _
    // Predicated region
    $region14: #{tpu_custom_call.1} parent=1 // pred_check
      _
    $region15: #{tpu_custom_call.1} parent=1 // pred_check_branch
      %18 = sbr.rel (0) target = $region17
    $region16: #{tpu_custom_call.1} parent=1 // pred_region
      _
    $region17: #{tpu_custom_call.1} parent=1 // pred_fallthru
      _
    // Predicated region
    $region18: #{tpu_custom_call.1} parent=1 // pred_check
      _
    $region19: #{tpu_custom_call.1} parent=1 // pred_check_branch
      %20 = sbr.rel (0) target = $region21
    $region20: #{tpu_custom_call.1} parent=1 // pred_region
      _
    $region21: #{tpu_custom_call.1} parent=1 // pred_fallthru
      _
    %v21 = vld [vmem:[%s0] sm:$0xff]
    %v22 = vld [vmem:[%s1] sm:$0xff]
    %v23 = vld [vmem:[%s2] sm:$0x1]
    %v24 = vld [vmem:[%s3] sm:$0xff]
    %v25 = vld [vmem:[%s4] sm:$0xff]
    %v26 = vlaneseq
    %v27 = vand.u32 %v26, 127
    %28 = vset.pattern.permute.xlu0 0
    %29 = vperm.xlu0 %28, %v22
    %v30 = vpop.permute.xlu0 %29
    %vm31 = vcmp.eq.s32.totalorder %v27, %v30
    %v32 = vsel %vm31, 1, 0
    %v33 = vcvt.s32.f32 %v32
    %vm34 = vcmask 31744
    %v35 = vsel %vm34, %v21, -inf
    %36 = vmax.xlane.f32.xlu0 %v35
    %v37 = vpop.xlane.xlu0 %36
    %v38 = vsub.f32 %v21, %v37
    %v39 = vmul.f32 %v38, 1.442695
    %v40 = vpow.pop %v39
    %v41 = vsel %vm34, %v40, 0.0
    %42 = vadd.xlane.f32.xlu0 %v41
    %v43 = vpop.xlane.xlu0 %42
    %v44 = vlog2.pop %v43
    %v45 = vmul.f32 %v44, 0.6931472
    %v46 = vadd.f32 %v37, %v45
    %v47 = vmul.f32 %v33, %v21
    %v48 = vsel %vm34, %v47, 0.0
    %49 = vadd.xlane.f32.xlu0 %v48
    %v50 = vpop.xlane.xlu0 %49
    %v51 = vsub.f32 %v46, %v50
    %v52 = vsub.f32 0.0, %v51
    %v53 = vmul.f32 %v52, 1.442695
    %v54 = vpow.pop %v53
    %vm55 = vcmp.eq.s32.totalorder %v22, 2
    %v56 = vsel %vm55, 0.75, 1.0
    %vm57 = vcmp.eq.s32.totalorder %v22, 1
    %v58 = vsel %vm57, 0.5, %v56
    %vm59 = vcmp.eq.s32.totalorder %v22, 0
    %v60 = vsel %vm59, 0.25, %v58
    %v61 = vsub.f32 1.0, %v54
    %v62 = vmul.f32 %v61, %v61
    %v63 = vmul.f32 %v60, %v62
    %v64 = vmul.f32 %v63, %v51
    %vm65 = vcmask 7168
    %v66 = vsel %vm65, %v64, 0.0
    %67 = vadd.xlane.f32.xlu0 %v66
    %v68 = vpop.xlane.xlu0 %67
    %v69 = vrot.slane %v68, 4
    %v70 = vadd.f32 %v68, %v69
    %v71 = vrot.slane %v70, 2
    %v72 = vadd.f32 %v70, %v71
    %v73 = vrot.slane %v72, 1
    %v74 = vadd.f32 %v72, %v73
    %s75 = vtos %v74
    %s76 = smul.f32 %s75, 0.125
    %v77 = vsel %vm55, 1.5, 0.5
    %v78 = vsel %vm57, 2.0, %v77
    %v79 = vsel %vm59, 1.0, %v78
    %v80 = vmul.f32 %v79, %v51
    %v81 = vsel %vm65, %v80, 0.0
    %82 = vadd.xlane.f32.xlu0 %v81
    %v83 = vpop.xlane.xlu0 %82
    %v84 = vrot.slane %v83, 4
    %v85 = vadd.f32 %v83, %v84
    %v86 = vrot.slane %v85, 2
    %v87 = vadd.f32 %v85, %v86
    %v88 = vrot.slane %v87, 1
    %v89 = vadd.f32 %v87, %v88
    %s90 = vtos %v89
    %v91 = vsel %vm65, %v79, 0.0
    %92 = vadd.xlane.f32.xlu0 %v91
    %v93 = vpop.xlane.xlu0 %92
    %v94 = vrot.slane %v93, 4
    %v95 = vadd.f32 %v93, %v94
    %v96 = vrot.slane %v95, 2
    %v97 = vadd.f32 %v95, %v96
    %v98 = vrot.slane %v97, 1
    %v99 = vadd.f32 %v97, %v98
    %s100 = vtos %v99
    %v101 = vstv %s100
    %v102 = vrcp.pop %v101
    %v103 = vmul.f32 %v101, %v102
    %v104 = vsub.f32 1.0, %v103
    %v105 = vmul.f32 %v102, %v104
    %v106 = vadd.f32 %v102, %v105
    %vm107 = vweird.f32 %v101
    %vm108 = vweird.f32 %v102
    %vm109 = vmor %vm107, %vm108
    %v110 = vsel %vm109, %v102, %v106
    %v111 = vand.u32 2147483647, %v101
    %vm112 = vcmp.eq.f32.partialorder %v111, 8.507059e+37
    %v113 = vand.u32 %v101, 2147483648
    %v114 = vor.u32 1.1754944e-38, %v113
    %v115 = vsel %vm112, %v114, %v110
    %s116 = vtos %v115
    %s117 = smul.f32 %s90, %s116
    %v118 = vmul.f32 %v24, %v24
    %vm119 = vcmask 261120
    %v120 = vsel %vm119, %v118, 0.0
    %121 = vadd.xlane.f32.xlu0 %v120
    %v122 = vpop.xlane.xlu0 %121
    %v123 = vmax.f32 %v122, 1e-24
    %v124 = vrsqrt.pop %v123
    %v125 = vmul.f32 %v124, %v123
    %v126 = vmul.f32 %v125, %v124
    %v127 = vmul.f32 0.5, %v126
    %v128 = vsub.f32 1.5, %v127
    %v129 = vmul.f32 %v124, %v128
    %vm130 = vweird.f32 %v123
    %vm131 = vweird.f32 %v124
    %vm132 = vmor %vm130, %vm131
    %v133 = vsel %vm132, %v124, %v129
    %v134 = vmul.f32 %v24, %v133
    %v136 = vsel %vm119, %v134, 0
    %138 = vmatpush.xpose.msra.mxu0 0.0
    %139 = vmatpush.xpose.msra.mxu0 0.0
    %140 = vmatpush.xpose.msra.mxu0 0.0
    %141 = vmatpush.xpose.msra.mxu0 0.0
    %142 = vmatpush.xpose.msra.mxu0 0.0
    %143 = vmatpush.xpose.msra.mxu0 0.0
    %144 = vmatpush.xpose.msra.mxu0 0.0
    %145 = vmatpush.xpose.msra.mxu0 0.0
    %146 = vmatpush.xpose.msra.mxu0 0.0
    %147 = vmatpush.xpose.msra.mxu0 0.0
    %148 = vmatpush.xpose.msra.mxu0 0.0
    %149 = vmatpush.xpose.msra.mxu0 0.0
    %150 = vmatpush.xpose.msra.mxu0 0.0
    %151 = vmatpush.xpose.msra.mxu0 0.0
    %152 = vmatpush.xpose.msra.mxu0 0.0
    %153 = vmatpush.xpose.msra.mxu0 %v136
    %154 = vmatmul.f32.gmra.mxu0 %v136
    %v155 = vpop.f32.mrf.mxu0
    %v156 = vadd.f32 0.0, %v155
    %157 = vdwg.mxu0
    %v158 = vperm.slane %v23, 0
    %vm159 = vcmp.eq.s32.totalorder %v30, %v158
    %v160 = vsub.f32 1.0, %v156
    %v161 = vsub.f32 %v156, 0.2
    %v162 = vmax.f32 %v161, 0.0
    %v163 = vsel %vm159, %v160, %v162
    %vm164 = vcmask 64512
    %v165 = vsel %vm164, %v163, 0.0
    %166 = vadd.xlane.f32.xlu0 %v165
    %v167 = vpop.xlane.xlu0 %166
    %v168 = vrot.slane %v167, 4
    %v169 = vadd.f32 %v167, %v168
    %v170 = vrot.slane %v169, 2
    %v171 = vadd.f32 %v169, %v170
    %v172 = vrot.slane %v171, 1
    %v173 = vadd.f32 %v171, %v172
    %s174 = vtos %v173
    %s175 = smul.f32 %s174, 0.015625
    %v176 = vsel %vm34, %v25, 0.0
    %177 = vadd.xlane.f32.xlu0 %v176
    %v178 = vpop.xlane.xlu0 %177
    %v179 = vmul.f32 %v33, %v25
    %v180 = vsel %vm34, %v179, 0.0
    %181 = vadd.xlane.f32.xlu0 %v180
    %v182 = vpop.xlane.xlu0 %181
    %vm183 = vcmp.lt.f32.partialorder %v178, 6.0
    %v184 = vrcp.pop %v178
    %v185 = vsel %vm183, %v184, 0.0
    %v186 = vsub.f32 0.0, %v185
    %v187 = vadd.f32 %v178, 1.0
    %v188 = vsel %vm183, %v187, %v178
    %vm189 = vcmp.lt.f32.partialorder %v188, 6.0
    %v190 = vrcp.pop %v188
    %v191 = vsel %vm189, %v190, 0.0
    %v192 = vsub.f32 %v186, %v191
    %v193 = vadd.f32 %v188, 1.0
    %v194 = vsel %vm189, %v193, %v188
    %vm195 = vcmp.lt.f32.partialorder %v194, 6.0
    %v196 = vrcp.pop %v194
    %v197 = vsel %vm195, %v196, 0.0
    %v198 = vsub.f32 %v192, %v197
    %v199 = vadd.f32 %v194, 1.0
    %v200 = vsel %vm195, %v199, %v194
    %vm201 = vcmp.lt.f32.partialorder %v200, 6.0
    %v202 = vrcp.pop %v200
    %v203 = vsel %vm201, %v202, 0.0
    %v204 = vsub.f32 %v198, %v203
    %v205 = vadd.f32 %v200, 1.0
    %v206 = vsel %vm201, %v205, %v200
    %vm207 = vcmp.lt.f32.partialorder %v206, 6.0
    %v208 = vrcp.pop %v206
    %v209 = vsel %vm207, %v208, 0.0
    %v210 = vsub.f32 %v204, %v209
    %v211 = vadd.f32 %v206, 1.0
    %v212 = vsel %vm207, %v211, %v206
    %vm213 = vcmp.lt.f32.partialorder %v212, 6.0
    %v214 = vrcp.pop %v212
    %v215 = vsel %vm213, %v214, 0.0
    %v216 = vsub.f32 %v210, %v215
    %v217 = vadd.f32 %v212, 1.0
    %v218 = vsel %vm213, %v217, %v212
    %v219 = vrcp.pop %v218
    %v220 = vmul.f32 %v219, %v219
    %v221 = vlog2.pop %v218
    %v222 = vmul.f32 %v221, 0.6931472
    %v223 = vadd.f32 %v216, %v222
    %v224 = vmul.f32 %v219, 0.5
    %v225 = vsub.f32 %v223, %v224
    %v226 = vrcp.pop 252.0
    %v227 = vmul.f32 252.0, %v226
    %v228 = vsub.f32 1.0, %v227
    %v229 = vmul.f32 %v226, %v228
    %v230 = vadd.f32 %v226, %v229
    %vm231 = vweird.f32 %v226
    %v232 = vsel %vm231, %v226, %v230
    %v233 = vmul.f32 %v220, %v232
    %v234 = vsub.f32 0.008333334, %v233
    %v235 = vmul.f32 %v220, %v234
    %v236 = vsub.f32 0.083333336, %v235
    %v237 = vmul.f32 %v220, %v236
    %v238 = vsub.f32 %v225, %v237
    %vm239 = vcmp.lt.f32.partialorder %v182, 6.0
    %v240 = vrcp.pop %v182
    %v241 = vsel %vm239, %v240, 0.0
    %v242 = vsub.f32 0.0, %v241
    %v243 = vadd.f32 %v182, 1.0
    %v244 = vsel %vm239, %v243, %v182
    %vm245 = vcmp.lt.f32.partialorder %v244, 6.0
    %v246 = vrcp.pop %v244
    %v247 = vsel %vm245, %v246, 0.0
    %v248 = vsub.f32 %v242, %v247
    %v249 = vadd.f32 %v244, 1.0
    %v250 = vsel %vm245, %v249, %v244
    %vm251 = vcmp.lt.f32.partialorder %v250, 6.0
    %v252 = vrcp.pop %v250
    %v253 = vsel %vm251, %v252, 0.0
    %v254 = vsub.f32 %v248, %v253
    %v255 = vadd.f32 %v250, 1.0
    %v256 = vsel %vm251, %v255, %v250
    %vm257 = vcmp.lt.f32.partialorder %v256, 6.0
    %v258 = vrcp.pop %v256
    %v259 = vsel %vm257, %v258, 0.0
    %v260 = vsub.f32 %v254, %v259
    %v261 = vadd.f32 %v256, 1.0
    %v262 = vsel %vm257, %v261, %v256
    %vm263 = vcmp.lt.f32.partialorder %v262, 6.0
    %v264 = vrcp.pop %v262
    %v265 = vsel %vm263, %v264, 0.0
    %v266 = vsub.f32 %v260, %v265
    %v267 = vadd.f32 %v262, 1.0
    %v268 = vsel %vm263, %v267, %v262
    %vm269 = vcmp.lt.f32.partialorder %v268, 6.0
    %v270 = vrcp.pop %v268
    %v271 = vsel %vm269, %v270, 0.0
    %v272 = vsub.f32 %v266, %v271
    %v273 = vadd.f32 %v268, 1.0
    %v274 = vsel %vm269, %v273, %v268
    %v275 = vrcp.pop %v274
    %v276 = vmul.f32 %v275, %v275
    %v277 = vlog2.pop %v274
    %v278 = vmul.f32 %v277, 0.6931472
    %v279 = vadd.f32 %v272, %v278
    %v280 = vmul.f32 %v275, 0.5
    %v281 = vsub.f32 %v279, %v280
    %v282 = vmul.f32 %v276, %v232
    %v283 = vsub.f32 0.008333334, %v282
    %v284 = vmul.f32 %v276, %v283
    %v285 = vsub.f32 0.083333336, %v284
    %v286 = vmul.f32 %v276, %v285
    %v287 = vsub.f32 %v281, %v286
    %v288 = vsub.f32 %v238, %v287
    %v289 = vsel %vm65, %v288, 0.0
    %290 = vadd.xlane.f32.xlu0 %v289
    %v291 = vpop.xlane.xlu0 %290
    %v292 = vrot.slane %v291, 4
    %v293 = vadd.f32 %v291, %v292
    %v294 = vrot.slane %v293, 2
    %v295 = vadd.f32 %v293, %v294
    %v296 = vrot.slane %v295, 1
    %v297 = vadd.f32 %v295, %v296
    %s298 = vtos %v297
    %s299 = smul.f32 %s298, 0.125
    %s300 = smul.f32 %s76, 0.6
    %s301 = smul.f32 %s117, 0.4
    %s302 = sadd.f32 %s300, %s301
    %s303 = smul.f32 %s175, 0.1
    %s304 = sadd.f32 %s302, %s303
    %s305 = smul.f32 %s299, 0.1
    %s306 = sadd.f32 %s304, %s305
    %s307 = scalar_lea.smem [#allocation2], 0
    %308 = sst [smem:[%s307]] %s306
    // Predicated region
    $region22: #{tpu_custom_call.1} parent=1 // pred_check
      _
    $region23: #{tpu_custom_call.1} parent=1 // pred_check_branch
      %310 = sbr.rel (0) target = $region25
    $region24: #{tpu_custom_call.1} parent=1 // pred_region
      %312 = vsyncadd [#allocation3], 0
      %s314 = sshll.u32 %s5, 4
      %s315 = int_to_ptr.hbm [resolvable:$true] %s314
      %317 = dma.smem_to_hbm [#allocation2], 16, %s315, [#allocation3]
    $region25: #{tpu_custom_call.1} parent=1 // pred_fallthru
      _
    // Predicated region
    $region26: #{tpu_custom_call.1} parent=1 // pred_check
      _
    $region27: #{tpu_custom_call.1} parent=1 // pred_check_branch
      %319 = sbr.rel (0) target = $region29
    $region28: #{tpu_custom_call.1} parent=1 // pred_region
      %321 = dma.done [#allocation3], 16
    $region29: #{tpu_custom_call.1} parent=1 // pred_fallthru
      _
    %322 = sfence
    %323 = vsyncpa [#allocation3], 1

</llo_original>
